<compile_context>
chip_gen: v5e
topology: v5e:2x2
jax: 0.10.0
libtpu: 0.0.40
codegen_flags: <defaults>
</compile_context>

<pallas_src>
import jax
import jax.numpy as jnp
from jax.experimental import pallas as pl
from jax.experimental.pallas import tpu as pltpu


def _round_up(a, m):
    return (a + m - 1) // m * m


def _sublane_multiple(dtype):
    # f32 -> 8, bf16 -> 16, int8/fp8 -> 32 (packed sublanes).
    return max(8, 32 // jnp.dtype(dtype).itemsize)


def _gated_encoding_kernel(x_ref, w_ref, b_ref, o_ref):
    x = x_ref[...]                                            # (tm, Hp), input dtype
    # bf16 matmul on the MXU, f32 accumulate; bias add in f32.
    logits = jnp.dot(x.astype(jnp.bfloat16), w_ref[...],
                     preferred_element_type=jnp.float32) + b_ref[0]
    gate = jax.nn.sigmoid(logits)                             # f32 (EUP)
    # Gating multiply in the input dtype (bf16 VALU on v6e/v7x; f32 for f32 in).
    o_ref[...] = gate.astype(o_ref.dtype) * x


def _choose_block_rows(M, Hp, itemsize, sublane):
    bytes_per_row = Hp * itemsize
    # Target ~2 MiB per x row tile (large DMAs, amortizes ~0.35us/step), capped
    # at ~8 MiB so double-buffered x + out tiles stay well inside scoped VMEM.
    tm = max(256, (2 << 20) // bytes_per_row)
    tm = min(tm, max(sublane, (8 << 20) // bytes_per_row))
    # Keep >= 2 grid steps so the "parallel" axis shards across v7x's two
    # TensorCores, and never exceed the actual row count.
    tm = min(tm, pl.cdiv(M, 2), M)
    return _round_up(max(tm, 1), sublane)


def _vmem_limit_bytes():
    # ~96 MiB on v5e/v6e (128 MiB physical), ~48 MiB on v7x (64 MiB physical).
    try:
        cap = int(pltpu.get_tpu_info().vmem_capacity_bytes)
        return min(cap * 3 // 4, 100 << 20)
    except Exception:
        return None   # fall back to the compiler default


def gated_encoding(x, w, b):
    """x: (B, L, H); w: (H, H) stored (in_features, out_features); b: (H,).

    Returns sigmoid(x @ w + b) * x, shape (B, L, H).
    """
    B, L, H = x.shape
    M = B * L
    itemsize = jnp.dtype(x.dtype).itemsize
    sublane = _sublane_multiple(x.dtype)

    # Lane-pad the feature dim only when it is not already 128-aligned.
    Hp = _round_up(H, 128)
    x2 = x.reshape(M, H)
    if Hp != H:
        x2 = jnp.pad(x2, ((0, 0), (0, Hp - H)))
        w = jnp.pad(w, ((0, Hp - H), (0, Hp - H)))
        b = jnp.pad(b, (0, Hp - H))
    wp = w.astype(jnp.bfloat16)                  # resident weight, half VMEM/HBM
    bp = b.astype(jnp.float32).reshape(1, Hp)

    tm = _choose_block_rows(M, Hp, itemsize, sublane)
    grid = (pl.cdiv(M, tm),)                     # ragged last tile: writes masked

    const = lambda i: (0, 0)
    out = pl.pallas_call(
        _gated_encoding_kernel,
        out_shape=jax.ShapeDtypeStruct((M, Hp), x.dtype),
        grid_spec=pltpu.PrefetchScalarGridSpec(
            num_scalar_prefetch=0,
            grid=grid,
            in_specs=[
                pl.BlockSpec((tm, Hp), lambda i: (i, 0)),            # x row tile
                pl.BlockSpec((Hp, Hp), const,
                             pipeline_mode=pl.Buffered(1)),          # weight (resident)
                pl.BlockSpec((1, Hp), const,
                             pipeline_mode=pl.Buffered(1)),          # bias   (resident)
            ],
            out_specs=pl.BlockSpec((tm, Hp), lambda i: (i, 0)),
        ),
        compiler_params=pltpu.CompilerParams(
            dimension_semantics=("parallel",),
            vmem_limit_bytes=_vmem_limit_bytes(),
        ),
    )(x2, wp, bp)

    if Hp != H:
        out = out[:, :H]
    return out.reshape(B, L, H)


def _reference(x, w, b):
    """Plain-JAX transcription of the PyTorch forward (f32 matmul)."""
    B, L, H = x.shape
    gate = jax.nn.sigmoid(x.reshape(-1, H) @ w + b).reshape(B, L, H)
    return gate * x


if __name__ == "__main__":
    B, L, H = 2, 8, 32

    key = jax.random.PRNGKey(0)
    k_x, k_w, k_b = jax.random.split(key, 3)

    x = jax.random.normal(k_x, (B, L, H), dtype=jnp.float32)
    w = 0.1 * jax.random.normal(k_w, (H, H), dtype=jnp.float32)
    b = 0.1 * jax.random.normal(k_b, (H,), dtype=jnp.float32)

    out = gated_encoding(x, w, b)
    out = jax.block_until_ready(out)

    ref = _reference(x, w, b)
    assert out.shape == (B, L, H)
    # Tolerance loosened vs the pure-f32 reference: the gate matmul runs in
    # bf16 on the MXU (f32 accumulate), which perturbs the sigmoid gate ~1e-3.
    assert jnp.allclose(out, ref, rtol=2e-2, atol=2e-2), \
        f"max abs diff {jnp.max(jnp.abs(out - ref))}"

    print("KERNEL_OK")
</pallas_src>

<mosaic_0001>
module attributes {stable_mosaic.version = 11 : i64} {
  func.func @_gated_encoding_kernel(%arg0: i32, %arg1: memref<8x128xf32, #tpu.memory_space<vmem>>, %arg2: memref<128x128xbf16, #tpu.memory_space<vmem>>, %arg3: memref<1x128xf32, #tpu.memory_space<vmem>>, %arg4: memref<8x128xf32, #tpu.memory_space<vmem>>) attributes {dimension_semantics = [#tpu.dimension_semantics<parallel>], iteration_bounds = array<i64: 2>, scalar_prefetch = 0 : i64, scratch_operands = 0 : i64, tpu.core_type = #tpu.core_type<tc>, window_params = [{transform_indices = @transform_0, window_bounds = array<i64: 8, 128>}, {pipeline_mode = #tpu.pipeline_mode<synchronous>, transform_indices = @transform_1, window_bounds = array<i64: 128, 128>}, {pipeline_mode = #tpu.pipeline_mode<synchronous>, transform_indices = @transform_2, window_bounds = array<i64: 1, 128>}, {transform_indices = @transform_3, window_bounds = array<i64: 8, 128>}]} {
    %c0 = arith.constant 0 : index
    %c0_0 = arith.constant 0 : index
    %0 = vector.load %arg1[%c0, %c0_0] : memref<8x128xf32, #tpu.memory_space<vmem>>, vector<8x128xf32>
    %1 = arith.truncf %0 : vector<8x128xf32> to vector<8x128xbf16>
    %c0_1 = arith.constant 0 : index
    %c0_2 = arith.constant 0 : index
    %2 = vector.load %arg2[%c0_1, %c0_2] : memref<128x128xbf16, #tpu.memory_space<vmem>>, vector<128x128xbf16>
    %cst = arith.constant dense<0.000000e+00> : vector<8x128xf32>
    %3 = tpu.matmul %1, %2, %cst {dimension_numbers = #tpu.dot_dimension_numbers<[1], [0], [0], [1], [0, 0, 1, 1], [], []>} : vector<8x128xbf16>, vector<128x128xbf16>, vector<8x128xf32> -> vector<8x128xf32>
    %c0_3 = arith.constant 0 : index
    %c0_4 = arith.constant 0 : index
    %4 = vector.load %arg3[%c0_3, %c0_4] : memref<1x128xf32, #tpu.memory_space<vmem>>, vector<1x128xf32>
    %5 = vector.shape_cast %4 : vector<1x128xf32> to vector<128xf32>
    %6 = vector.shape_cast %5 : vector<128xf32> to vector<1x128xf32>
    %7 = vector.broadcast %6 : vector<1x128xf32> to vector<8x128xf32>
    %8 = arith.addf %3, %7 : vector<8x128xf32>
    %9 = arith.negf %8 : vector<8x128xf32>
    %10 = math.exp %9 : vector<8x128xf32>
    %cst_5 = arith.constant 1.000000e+00 : f32
    %11 = vector.broadcast %cst_5 : f32 to vector<8x128xf32>
    %12 = arith.addf %11, %10 : vector<8x128xf32>
    %13 = arith.divf %11, %12 : vector<8x128xf32>
    %14 = arith.mulf %13, %0 : vector<8x128xf32>
    %c0_6 = arith.constant 0 : index
    %c0_7 = arith.constant 0 : index
    %15 = vector.load %arg4[%c0_6, %c0_7] : memref<8x128xf32, #tpu.memory_space<vmem>>, vector<8x128xf32>
    tpu.vector_store %arg4[%c0_6, %c0_7], %14 {strides = array<i32>} : memref<8x128xf32, #tpu.memory_space<vmem>>, vector<8x128xf32>,
    return
  }
  func.func @transform_0(%arg0: i32) -> (i32, i32) {
    %c0_i32 = arith.constant 0 : i32
    %c0_i32_0 = arith.constant 0 : i32
    return %arg0, %c0_i32 : i32, i32
  }
  func.func @transform_1(%arg0: i32) -> (i32, i32) {
    %c0_i32 = arith.constant 0 : i32
    %c0_i32_0 = arith.constant 0 : i32
    %c0_i32_1 = arith.constant 0 : i32
    return %c0_i32, %c0_i32_0 : i32, i32
  }
  func.func @transform_2(%arg0: i32) -> (i32, i32) {
    %c0_i32 = arith.constant 0 : i32
    %c0_i32_0 = arith.constant 0 : i32
    %c0_i32_1 = arith.constant 0 : i32
    return %c0_i32, %c0_i32_0 : i32, i32
  }
  func.func @transform_3(%arg0: i32) -> (i32, i32) {
    %c0_i32 = arith.constant 0 : i32
    %c0_i32_0 = arith.constant 0 : i32
    return %arg0, %c0_i32 : i32, i32
  }
}

</mosaic_0001>

<llo_original>
// kernel: tpu_custom_call.1
$region0: #{tpu_custom_call.1}
  #allocation0 [shape = 'u32[]', space=smem, size = 0x4, offset = 0x4, fixed_abs, tag = 'smem constant byte address 0x4 - core index']
  #allocation1 [shape = 'u32[72,128]{1,0:T(1,128)}', space=vmem, size = 0x9000, scoped, tag = 'internal scratch']
  %s0 = inlined_call_operand.hbm [shape: f32[16,128], index: 0, kind: input, shape index: {}]
  %s1 = inlined_call_operand.hbm [shape: bf16[128,128], index: 1, kind: input, shape index: {}]
  %s2 = inlined_call_operand.vmem [shape: f32[1,128], index: 2, kind: input, shape index: {}]
  %s3 = inlined_call_operand.hbm [shape: f32[16,128], index: 3, kind: output, shape index: {}]
  %s4 = sld [smem:[#allocation0]]
  $region53: #{tpu_custom_call.1} parent=0
    _
  %s6 = ssub.s32 1, %s4
  %s7 = scalar_select 0, %s6, %s4
  $region1: #{tpu_custom_call.1} parent=0
    #allocation2 [shape = 'u8[8192]{0}', space=vmem, size = 0x2000, scoped, tag = 'input window, operand 0']
    #allocation3 [shape = 's32[2]{0}', space=sflag, size = 0x8, scoped, tag = 'scoped memory for tpu_custom_call.1']
    #allocation4 [shape = 's32[2]{0}', space=sflag, size = 0x8, scoped, tag = 'scoped memory for tpu_custom_call.1']
    #allocation5 [shape = 'u8[32768]{0}', space=vmem, size = 0x8000, scoped, tag = 'input window, operand 1, single buffered']
    #allocation6 [shape = 's32[1]{0}', space=sflag, size = 0x4, scoped, tag = 'scoped memory for tpu_custom_call.1']
    #allocation7 [shape = 'u8[8192]{0}', space=vmem, size = 0x2000, scoped, tag = 'output window, operand 0']
    %8 = vsyncpa [#allocation3], 0
    %s9 = scalar_lea.sflag [#allocation3], 1
    %10 = vsyncpa %s9, 0
    %11 = vsyncpa [#allocation6], 0
    %12 = vsyncpa [#allocation4], 0
    %s13 = scalar_lea.sflag [#allocation4], 1
    %14 = vsyncpa %s13, 0
    loop: start=0, step=1, limit=4
    $region2: #{tpu_custom_call.1} parent=1 // loop_pre_header
      _
    $region3: #{tpu_custom_call.1} parent=1 // loop_header
      %s16 = sphi 0, %s20
      %p17 = scmp.ge.s32.totalorder %s16, 4
      %s26 = sphi 0, %s28
      %s29 = sphi 0, %s26
      %s30 = sphi 0, %s29
      %s46 = sphi 0, %s30
      %s50 = sphi 0, %s50
      %s52 = sphi 0, %s50
      %s53 = sphi 0, %s52
      %s67 = sphi 0, %s53
      %s71 = sphi 0, %s71
      %s73 = sphi 0, %s71
      %s74 = sphi 0, %s73
      %s88 = sphi 0, %s74
      %s94 = sphi 0, %s96
      %s97 = sphi 0, %s94
      %s98 = sphi 0, %s97
      %s114 = sphi 0, %s98
    $region4: #{tpu_custom_call.1} parent=1 // loop_header_branch
      %19 = sbr.rel (%p17) target = $region8
    $region5: #{tpu_custom_call.1} parent=1 // loop_body
      %s21 = ssub.s32 %s16, 1
      %s22 = ssub.s32 %s16, 2
      %s23 = sadd.s32 %s16, 1
      %s24 = ssub.s32 %s16, %s23
      %p25 = scmp.eq.s32.totalorder %s24, 0
      %s27 = sadd.s32 %s26, 1
      %s28 = scalar_select %p25, %s26, %s27
      %p31 = pneg %p25
      %p32 = scmp.eq.s32.totalorder %s16, 1
      %p33 = por %p31, %p32
      %p34 = scmp.ne.s32.totalorder %s26, %s29
      %p35 = scmp.eq.s32.totalorder %s16, 0
      %p36 = por %p34, %p35
      %p37 = scmp.ne.s32.totalorder %s26, %s29
      %p38 = scmp.eq.s32.totalorder %s21, 1
      %p39 = por %p37, %p38
      %p40 = scmp.ne.s32.totalorder %s29, %s30
      %p41 = scmp.eq.s32.totalorder %s21, 0
      %p42 = por %p40, %p41
      %p43 = scmp.ne.s32.totalorder %s29, %s30
      %p44 = scmp.eq.s32.totalorder %s22, 1
      %p45 = por %p43, %p44
      %p47 = scmp.ne.s32.totalorder %s30, %s46
      %p48 = scmp.eq.s32.totalorder %s22, 0
      %p49 = por %p47, %p48
      %s51 = sadd.s32 %s50, 1
      %p54 = scmp.eq.s32.totalorder %s16, 1
      %p55 = scmp.ne.s32.totalorder %s50, %s52
      %p56 = scmp.eq.s32.totalorder %s16, 0
      %p57 = por %p55, %p56
      %p58 = scmp.ne.s32.totalorder %s50, %s52
      %p59 = scmp.eq.s32.totalorder %s21, 1
      %p60 = por %p58, %p59
      %p61 = scmp.ne.s32.totalorder %s52, %s53
      %p62 = scmp.eq.s32.totalorder %s21, 0
      %p63 = por %p61, %p62
      %p64 = scmp.ne.s32.totalorder %s52, %s53
      %p65 = scmp.eq.s32.totalorder %s22, 1
      %p66 = por %p64, %p65
      %p68 = scmp.ne.s32.totalorder %s53, %s67
      %p69 = scmp.eq.s32.totalorder %s22, 0
      %p70 = por %p68, %p69
      %s72 = sadd.s32 %s71, 1
      %p75 = scmp.eq.s32.totalorder %s16, 1
      %p76 = scmp.ne.s32.totalorder %s71, %s73
      %p77 = scmp.eq.s32.totalorder %s16, 0
      %p78 = por %p76, %p77
      %p79 = scmp.ne.s32.totalorder %s71, %s73
      %p80 = scmp.eq.s32.totalorder %s21, 1
      %p81 = por %p79, %p80
      %p82 = scmp.ne.s32.totalorder %s73, %s74
      %p83 = scmp.eq.s32.totalorder %s21, 0
      %p84 = por %p82, %p83
      %p85 = scmp.ne.s32.totalorder %s73, %s74
      %p86 = scmp.eq.s32.totalorder %s22, 1
      %p87 = por %p85, %p86
      %p89 = scmp.ne.s32.totalorder %s74, %s88
      %p90 = scmp.eq.s32.totalorder %s22, 0
      %p91 = por %p89, %p90
      %s92 = ssub.s32 %s16, %s23
      %p93 = scmp.eq.s32.totalorder %s92, 0
      %s95 = sadd.s32 %s94, 1
      %s96 = scalar_select %p93, %s94, %s95
      %p99 = pneg %p93
      %p100 = scmp.eq.s32.totalorder %s16, 1
      %p101 = por %p99, %p100
      %p102 = scmp.ne.s32.totalorder %s94, %s97
      %p103 = scmp.eq.s32.totalorder %s16, 0
      %p104 = por %p102, %p103
      %p105 = scmp.ne.s32.totalorder %s94, %s97
      %p106 = scmp.eq.s32.totalorder %s21, 1
      %p107 = por %p105, %p106
      %p108 = scmp.ne.s32.totalorder %s97, %s98
      %p109 = scmp.eq.s32.totalorder %s21, 0
      %p110 = por %p108, %p109
      %p111 = scmp.ne.s32.totalorder %s97, %s98
      %p112 = scmp.eq.s32.totalorder %s22, 1
      %p113 = por %p111, %p112
      %p115 = scmp.ne.s32.totalorder %s98, %s114
      %p116 = scmp.eq.s32.totalorder %s22, 0
      %p117 = por %p115, %p116
      %p118 = scmp.le.s32.totalorder 1, %s16
      %p119 = scmp.lt.s32.totalorder %s16, 3
      %p120 = pnand %p118, %p119
      %p121 = pneg %p120
      // Predicated region
      $region9: #{tpu_custom_call.1} parent=5 // pred_check
        _
      $region10: #{tpu_custom_call.1} parent=5 // pred_check_branch
        %123 = sbr.rel (%p120) target = $region12
      $region11: #{tpu_custom_call.1} parent=5 // pred_region
        %s124 = ssub.s32 %s16, 1
        // Predicated region
        $region13: #{tpu_custom_call.1} parent=11 // pred_check
          %p125 = pneg %p63
        $region14: #{tpu_custom_call.1} parent=11 // pred_check_branch
          %127 = sbr.rel (%p125) target = $region16
        $region15: #{tpu_custom_call.1} parent=11 // pred_region
          %129 = vsyncadd [#allocation6], 0
          %s130 = sshll.u32 %s1, 4
          %s131 = int_to_ptr.hbm [resolvable:$true] %s130
          %s132 = sshll.u32 [#allocation5], 4
          %s133 = int_to_ptr.vmem [resolvable:$true] %s132
          %138 = dma.hbm_to_vmem [thread:$0]  %s131, 1024, %s133, [#allocation6], 64, 64, 4
        $region16: #{tpu_custom_call.1} parent=11 // pred_fallthru
          _
        // Predicated region
        $region17: #{tpu_custom_call.1} parent=11 // pred_check
          %p139 = pneg %p84
        $region18: #{tpu_custom_call.1} parent=11 // pred_check_branch
          %141 = sbr.rel (%p139) target = $region20
        $region19: #{tpu_custom_call.1} parent=11 // pred_region
          _
        $region20: #{tpu_custom_call.1} parent=11 // pred_fallthru
          _
      $region12: #{tpu_custom_call.1} parent=5 // pred_fallthru
        _
      %p142 = scmp.lt.s32.totalorder %s16, 2
      // Predicated region
      $region21: #{tpu_custom_call.1} parent=5 // pred_check
        %p143 = pneg %p142
      $region22: #{tpu_custom_call.1} parent=5 // pred_check_branch
        %145 = sbr.rel (%p143) target = $region24
      $region23: #{tpu_custom_call.1} parent=5 // pred_region
        // Predicated region
        $region25: #{tpu_custom_call.1} parent=23 // pred_check
          %p146 = pneg %p36
        $region26: #{tpu_custom_call.1} parent=23 // pred_check_branch
          %148 = sbr.rel (%p146) target = $region28
        $region27: #{tpu_custom_call.1} parent=23 // pred_region
          %s149 = sand.u32 %s26, 1
          %s150 = scalar_lea.sflag [#allocation3], %s149
          %s151 = sand.u32 %s26, 1
          %s152 = smul.addr %s151, 8
          %s153 = scalar_lea.vmem [#allocation2], %s152
          %155 = vsyncadd %s150, 0
          %s156 = smul.addr %s16, 8
          %s157 = scalar_lea.hbm %s0, %s156
          %s159 = sshll.u32 %s157, 4
          %s160 = int_to_ptr.hbm [resolvable:$true] %s159
          %s161 = sshll.u32 %s153, 4
          %s162 = int_to_ptr.vmem [resolvable:$true] %s161
          %164 = dma.hbm_to_vmem [thread:$0]  %s160, 128, %s162, %s150
        $region28: #{tpu_custom_call.1} parent=23 // pred_fallthru
          _
      $region24: #{tpu_custom_call.1} parent=5 // pred_fallthru
        _
      %p165 = scmp.le.s32.totalorder 1, %s16
      %p166 = scmp.lt.s32.totalorder %s16, 3
      %p167 = pnand %p165, %p166
      %p168 = pneg %p167
      // Predicated region
      $region29: #{tpu_custom_call.1} parent=5 // pred_check
        _
      $region30: #{tpu_custom_call.1} parent=5 // pred_check_branch
        %170 = sbr.rel (%p167) target = $region32
      $region31: #{tpu_custom_call.1} parent=5 // pred_region
        %s171 = ssub.s32 %s16, 1
        %s172 = sand.u32 %s29, 1
        %s173 = scalar_lea.sflag [#allocation3], %s172
        %s174 = sand.u32 %s29, 1
        %s175 = smul.addr %s174, 8
        %s176 = scalar_lea.vmem [#allocation2], %s175
        // Predicated region
        $region33: #{tpu_custom_call.1} parent=31 // pred_check
          %p177 = pneg %p42
        $region34: #{tpu_custom_call.1} parent=31 // pred_check_branch
          %179 = sbr.rel (%p177) target = $region36
        $region35: #{tpu_custom_call.1} parent=31 // pred_region
          %181 = dma.done %s173, 128
        $region36: #{tpu_custom_call.1} parent=31 // pred_fallthru
          _
        // Predicated region
        $region37: #{tpu_custom_call.1} parent=31 // pred_check
          %p182 = pneg %p63
        $region38: #{tpu_custom_call.1} parent=31 // pred_check_branch
          %184 = sbr.rel (%p182) target = $region40
        $region39: #{tpu_custom_call.1} parent=31 // pred_region
          %186 = dma.done [#allocation6], 1024
        $region40: #{tpu_custom_call.1} parent=31 // pred_fallthru
          _
        %s187 = sand.u32 %s29, 1
        %s188 = scalar_lea.sflag [#allocation3], %s187
        %s189 = sand.u32 %s29, 1
        %s190 = smul.addr %s189, 8
        %s191 = scalar_lea.vmem [#allocation2], %s190
        %p192 = pneg %p42
        %p193 = pneg %p39
        %p194 = pneg %p63
        %p195 = pneg %p60
        %p196 = pneg %p84
        %p197 = pneg %p81
        %p198 = pneg %p110
        %p199 = pneg %p107
        %s200 = sand.u32 %s97, 1
        %s201 = scalar_lea.sflag [#allocation4], %s200
        %s202 = sand.u32 %s97, 1
        %s203 = smul.addr %s202, 8
        %s204 = scalar_lea.vmem [#allocation7], %s203
        %v205 = vld [vmem:[%s176] sm:$0xff]
        %v206 = vpack.c.bf16 %v205, %v205
        %v207 = vld [vmem:[#allocation5] sm:$0xf]
        %v208 = vld [vmem:[#allocation5 + $0x4] sm:$0xf]
        %v209 = vld [vmem:[#allocation5 + $0x8] sm:$0xf]
        %v210 = vld [vmem:[#allocation5 + $0xc] sm:$0xf]
        %v211 = vld [vmem:[#allocation5 + $0x10] sm:$0xf]
        %v212 = vld [vmem:[#allocation5 + $0x14] sm:$0xf]
        %v213 = vld [vmem:[#allocation5 + $0x18] sm:$0xf]
        %v214 = vld [vmem:[#allocation5 + $0x1c] sm:$0xf]
        %v215 = vld [vmem:[#allocation5 + $0x20] sm:$0xf]
        %v216 = vld [vmem:[#allocation5 + $0x24] sm:$0xf]
        %v217 = vld [vmem:[#allocation5 + $0x28] sm:$0xf]
        %v218 = vld [vmem:[#allocation5 + $0x2c] sm:$0xf]
        %v219 = vld [vmem:[#allocation5 + $0x30] sm:$0xf]
        %v220 = vld [vmem:[#allocation5 + $0x34] sm:$0xf]
        %v221 = vld [vmem:[#allocation5 + $0x38] sm:$0xf]
        %v222 = vld [vmem:[#allocation5 + $0x3c] sm:$0xf]
        %v223 = vld [vmem:[%s2] sm:$0x1]
        %v225 = vperm.slane %v223, 0
        %v243 = vunpack.c.l.b16 %v207
        %v244 = vunpack.c.l.b16 %v208
        %v245 = vunpack.c.l.b16 %v209
        %v246 = vunpack.c.l.b16 %v210
        %v247 = vunpack.c.l.b16 %v211
        %v248 = vunpack.c.l.b16 %v212
        %v249 = vunpack.c.l.b16 %v213
        %v250 = vunpack.c.l.b16 %v214
        %v251 = vunpack.c.l.b16 %v215
        %v252 = vunpack.c.l.b16 %v216
        %v253 = vunpack.c.l.b16 %v217
        %v254 = vunpack.c.l.b16 %v218
        %v255 = vunpack.c.l.b16 %v219
        %v256 = vunpack.c.l.b16 %v220
        %v257 = vunpack.c.l.b16 %v221
        %v258 = vunpack.c.l.b16 %v222
        %v259 = vpack.c.b16 %v244, %v243
        %v260 = vpack.c.b16 %v246, %v245
        %v261 = vpack.c.b16 %v248, %v247
        %v262 = vpack.c.b16 %v250, %v249
        %v263 = vpack.c.b16 %v252, %v251
        %v264 = vpack.c.b16 %v254, %v253
        %v265 = vpack.c.b16 %v256, %v255
        %v266 = vpack.c.b16 %v258, %v257
        %275 = vmatpush.bf16.msra.mxu0 %v266
        %276 = vmatpush.bf16.msra.mxu0 %v265
        %277 = vmatpush.bf16.msra.mxu0 %v264
        %278 = vmatpush.bf16.msra.mxu0 %v263
        %279 = vmatpush.bf16.msra.mxu0 %v262
        %280 = vmatpush.bf16.msra.mxu0 %v261
        %281 = vmatpush.bf16.msra.mxu0 %v260
        %282 = vmatpush.bf16.msra.mxu0 %v259
        %283 = vmatmul.bf16.gmra.mxu0 %v206
        %v284 = vpop.f32.mrf.mxu0
        %v285 = vadd.f32 %v225, %v284
        %v286 = vpop.f32.mrf.mxu0
        %287 = vdwg.mxu0
        %v288 = vxor.u32 %v285, 2147483648
        %v289 = vmul.f32 %v288, 1.442695
        %v290 = vpow.pop %v289
        %v291 = vadd.f32 %v290, 1.0
        %v292 = vrcp.pop %v291
        %v293 = vmul.f32 %v291, %v292
        %v294 = vsub.f32 1.0, %v293
        %v295 = vmul.f32 %v292, %v294
        %v296 = vadd.f32 %v292, %v295
        %vm297 = vweird.f32 %v291
        %vm298 = vweird.f32 %v292
        %vm299 = vmor %vm297, %vm298
        %v300 = vsel %vm299, %v292, %v296
        %v301 = vand.u32 2147483647, %v291
        %vm302 = vcmp.eq.f32.partialorder %v301, 8.507059e+37
        %v303 = vand.u32 %v291, 2147483648
        %v304 = vor.u32 1.1754944e-38, %v303
        %v305 = vsel %vm302, %v304, %v300
        %v306 = vmul.f32 1.0, %v305
        %v307 = vmul.f32 %v306, %v205
        %308 = vst [vmem:[%s204] sm:$0xff] %v307
        %s309 = sand.u32 %s97, 1
        %s310 = scalar_lea.sflag [#allocation4], %s309
        %s311 = sand.u32 %s97, 1
        %s312 = smul.addr %s311, 8
        %s313 = scalar_lea.vmem [#allocation7], %s312
        // Predicated region
        $region41: #{tpu_custom_call.1} parent=31 // pred_check
          %p314 = pneg %p107
        $region42: #{tpu_custom_call.1} parent=31 // pred_check_branch
          %316 = sbr.rel (%p314) target = $region44
        $region43: #{tpu_custom_call.1} parent=31 // pred_region
          %318 = vsyncadd %s310, 0
          %s319 = smul.addr %s21, 8
          %s320 = scalar_lea.hbm %s3, %s319
          %s322 = sshll.u32 %s313, 4
          %s323 = int_to_ptr.vmem [resolvable:$true] %s322
          %s324 = sshll.u32 %s320, 4
          %s325 = int_to_ptr.hbm [resolvable:$true] %s324
          %327 = dma.vmem_to_hbm [thread:$0]  %s323, 128, %s325, %s310
        $region44: #{tpu_custom_call.1} parent=31 // pred_fallthru
          _
      $region32: #{tpu_custom_call.1} parent=5 // pred_fallthru
        _
      %p328 = scmp.le.s32.totalorder 2, %s16
      // Predicated region
      $region45: #{tpu_custom_call.1} parent=5 // pred_check
        %p329 = pneg %p328
      $region46: #{tpu_custom_call.1} parent=5 // pred_check_branch
        %331 = sbr.rel (%p329) target = $region48
      $region47: #{tpu_custom_call.1} parent=5 // pred_region
        %s332 = ssub.s32 %s16, 2
        // Predicated region
        $region49: #{tpu_custom_call.1} parent=47 // pred_check
          %p333 = pneg %p113
        $region50: #{tpu_custom_call.1} parent=47 // pred_check_branch
          %335 = sbr.rel (%p333) target = $region52
        $region51: #{tpu_custom_call.1} parent=47 // pred_region
          %s336 = sand.u32 %s98, 1
          %s337 = scalar_lea.sflag [#allocation4], %s336
          %s338 = sand.u32 %s98, 1
          %s339 = smul.addr %s338, 8
          %s340 = scalar_lea.vmem [#allocation7], %s339
          %342 = dma.done %s337, 128
        $region52: #{tpu_custom_call.1} parent=47 // pred_fallthru
          _
      $region48: #{tpu_custom_call.1} parent=5 // pred_fallthru
        _
    $region6: #{tpu_custom_call.1} parent=1 // loop_footer
      %s20 = sadd.s32 1, %s16
    $region7: #{tpu_custom_call.1} parent=1 // loop_footer_branch
      %15 = sbr.rel target = $region3
    $region8: #{tpu_custom_call.1} parent=1 // loop_exit
      _
    %343 = vsyncpa [#allocation3], 1
    %s344 = scalar_lea.sflag [#allocation3], 1
    %345 = vsyncpa %s344, 1
    %346 = vsyncpa [#allocation6], 1
    %347 = vsyncpa [#allocation4], 1
    %s348 = scalar_lea.sflag [#allocation4], 1
    %349 = vsyncpa %s348, 1

</llo_original>
